<compile_context>
chip_gen: v7x
topology: tpu7x:2x2x1
jax: 0.10.0
libtpu: 0.0.40
codegen_flags: <defaults>
</compile_context>

<pallas_src>
import functools

import jax
import jax.numpy as jnp
from jax.experimental import pallas as pl
from jax.experimental.pallas import tpu as pltpu


def _round_up(a: int, b: int) -> int:
    return (a + b - 1) // b * b


def _device_kind() -> str:
    try:
        return jax.devices()[0].device_kind.lower()
    except Exception:
        return ""


def _mult_kernel(x_ref, z_ref, wt_ref, vt_ref, ut_ref, ub_ref, y_ref, acc_ref,
                 *, n_i):
    """One (bm, bk) output tile of
         y = sum_i (z[:, i] * x) @ W[i]^T  +  x @ V^T  +  z @ U^T  +  Ub.

    The multiplicative (z, x) outer product is never materialized in HBM: each
    i-slab is formed as a VPU lane-broadcast multiply right before its MXU
    matmul (the VPU mul hides under the MXU slot).
    """
    x = x_ref[...]                                   # (bm, J_pad)
    z = z_ref[...]                                   # (bm, I_pad)

    # Bias folded into the accumulator init (no epilogue add).
    acc_ref[...] = jnp.broadcast_to(ub_ref[...].astype(jnp.float32),
                                    acc_ref.shape)

    # Additive terms: x @ V^T and z @ U^T.
    acc_ref[...] += jnp.dot(x, vt_ref[...], preferred_element_type=jnp.float32)
    acc_ref[...] += jnp.dot(z, ut_ref[...], preferred_element_type=jnp.float32)

    # Multiplicative term: sum_i (z_i * x) @ W[i]^T (static unroll over i).
    for i in range(n_i):
        xi = z[:, i:i + 1] * x                       # (bm, J_pad) VPU broadcast
        acc_ref[...] += jnp.dot(xi, wt_ref[i],
                                preferred_element_type=jnp.float32)

    y_ref[...] = acc_ref[...].astype(y_ref.dtype)


def prepare_params(W, Vw, Uw, Ub):
    """One-time parameter re-layout: out_size on lanes, features zero-padded."""
    I, K, J = W.shape                                # (z_size, out_size, x_size)
    kind = _device_kind()

    I_pad = _round_up(I, 128)
    J_pad = _round_up(J, 128)
    K_pad = _round_up(K, 128)

    # v5e: 128-lane output tiles (4x128x128 MXU, firmly mem-bound there).
    bk = 256 if (K_pad % 256 == 0 and "v5" not in kind) else 128

    # Wt[i, j, k] = W[i, k, j]; all feature axes zero-padded to lane multiples.
    Wt = jnp.pad(jnp.transpose(W, (0, 2, 1)),
                 ((0, 0), (0, J_pad - J), (0, K_pad - K)))
    Vt = jnp.pad(jnp.transpose(Vw), ((0, J_pad - J), (0, K_pad - K)))
    Ut = jnp.pad(jnp.transpose(Uw), ((0, I_pad - I), (0, K_pad - K)))
    Ubp = jnp.pad(Ub, (0, K_pad - K)).reshape(1, K_pad)

    # Per-generation VMEM ceiling: v7x has 64 MiB physical, v5e/v6e have 128.
    if "v7" in kind:
        vmem_limit = 48 * 1024 * 1024
    elif "v5" in kind or "v6" in kind:
        vmem_limit = 96 * 1024 * 1024
    else:
        vmem_limit = 48 * 1024 * 1024

    return dict(Wt=Wt, Vt=Vt, Ut=Ut, Ub=Ubp, I=I, J=J, K=K,
                I_pad=I_pad, J_pad=J_pad, K_pad=K_pad, bk=bk,
                vmem_limit=vmem_limit)


def multiplicative_layer(x, z, params):
    """x: (B, x_size), z: (B, z_size) -> y: (B, out_size)."""
    Wt, Vt, Ut, Ubp = params["Wt"], params["Vt"], params["Ut"], params["Ub"]
    I, J, K = params["I"], params["J"], params["K"]
    I_pad, J_pad, K_pad = params["I_pad"], params["J_pad"], params["K_pad"]
    bk, vmem_limit = params["bk"], params["vmem_limit"]

    B = x.shape[0]

    # Pick the batch tile first and pad B up to it (a few dead rows are far
    # cheaper than re-streaming the weights with a tiny bm).
    bm = min(512, _round_up(B, 8))

    # Keep double-buffered tiles inside the per-generation VMEM budget.
    def vmem_est(bm_, bk_):
        ins = 2 * (bm_ * (J_pad + I_pad)             # x, z tiles
                   + I * J_pad * bk_                 # W slab
                   + (J_pad + I_pad + 1) * bk_)      # V^T, U^T, bias tiles
        outs = 2 * bm_ * bk_
        acc = bm_ * bk_
        return 4 * (ins + outs + acc)

    budget = int(vmem_limit * 0.75)
    while vmem_est(bm, bk) > budget:
        if bm > 8:
            bm = max(8, _round_up(bm // 2, 8))
        elif bk > 128:
            bk //= 2
        else:
            break
    # TODO(synk): for very large z_size*x_size weights (W slab over budget even
    # at bm=8, bk=128), add an "arbitrary" contraction grid axis that streams W
    # in i-chunks with pl.when init/finalize instead of holding the full slab.

    B_pad = _round_up(B, bm)
    nb, nk = B_pad // bm, K_pad // bk

    # v7x megacore: try to have >= 2 programs across the parallel grid axes.
    if nb * nk == 1:
        if K_pad // 128 >= 2:
            bk = 128
            nk = K_pad // bk
        elif bm >= 16 and (bm // 2) % 8 == 0:
            bm = bm // 2
            B_pad = _round_up(B, bm)
            nb = B_pad // bm

    # Only the small activations are padded per call; no (B, I*J) outer
    # product is ever staged in HBM.
    x_p = jnp.pad(x, ((0, B_pad - B), (0, J_pad - J)))
    z_p = jnp.pad(z, ((0, B_pad - B), (0, I_pad - I)))

    kernel = functools.partial(_mult_kernel, n_i=I)

    # Out tiles on the outer grid axis -> the weight slab (index depends only
    # on j) is fetched once per out tile and reused across all batch tiles.
    grid = (nk, nb)

    y_pad = pl.pallas_call(
        kernel,
        out_shape=jax.ShapeDtypeStruct((B_pad, K_pad), x.dtype),
        grid_spec=pltpu.PrefetchScalarGridSpec(
            num_scalar_prefetch=0,
            grid=grid,
            in_specs=[
                pl.BlockSpec((bm, J_pad), lambda j, i: (i, 0)),        # x
                pl.BlockSpec((bm, I_pad), lambda j, i: (i, 0)),        # z
                pl.BlockSpec((I, J_pad, bk), lambda j, i: (0, 0, j)),  # W slab
                pl.BlockSpec((J_pad, bk), lambda j, i: (0, j)),        # V^T
                pl.BlockSpec((I_pad, bk), lambda j, i: (0, j)),        # U^T
                pl.BlockSpec((1, bk), lambda j, i: (0, j)),            # bias
            ],
            out_specs=pl.BlockSpec((bm, bk), lambda j, i: (i, j)),
            scratch_shapes=[pltpu.VMEM((bm, bk), jnp.float32)],
        ),
        compiler_params=pltpu.CompilerParams(
            dimension_semantics=("parallel", "parallel"),
            vmem_limit_bytes=vmem_limit,
        ),
    )(x_p, z_p, Wt, Vt, Ut, Ubp)

    return y_pad[:B, :K]


def reference(x, z, W, Vw, Uw, Ub):
    zTW = jnp.einsum('ij,jkl->ikl', z, W)
    W_prime = zTW + Vw
    b_prime = z @ Uw.T + Ub
    W_primex = jnp.einsum('ij,ikj->ik', x, W_prime)
    return W_primex + b_prime


if __name__ == "__main__":
    # Small shapes consistent with the module's forward.
    B, z_size, x_size, out_size = 2, 8, 16, 32

    key = jax.random.PRNGKey(0)
    kx, kz, kW, kV, kUw, kUb = jax.random.split(key, 6)

    x = jax.random.normal(kx, (B, x_size), dtype=jnp.float32)
    z = jax.random.normal(kz, (B, z_size), dtype=jnp.float32)

    # Deterministic synthetic parameters (std=0.1, like small_weights init).
    W = 0.1 * jax.random.normal(kW, (z_size, out_size, x_size), dtype=jnp.float32)
    Vw = 0.1 * jax.random.normal(kV, (out_size, x_size), dtype=jnp.float32)
    Uw = 0.1 * jax.random.normal(kUw, (out_size, z_size), dtype=jnp.float32)
    Ub = 0.1 * jax.random.normal(kUb, (out_size,), dtype=jnp.float32)

    params = prepare_params(W, Vw, Uw, Ub)     # one-time parameter glue
    y = multiplicative_layer(x, z, params)
    y = jax.block_until_ready(y)

    y_ref = reference(x, z, W, Vw, Uw, Ub)
    assert y.shape == (B, out_size)
    assert jnp.allclose(y, y_ref, atol=1e-4, rtol=1e-5), "mismatch vs reference"

    print("KERNEL_OK")
</pallas_src>

<mosaic_0001>
module attributes {stable_mosaic.version = 11 : i64} {
  func.func @_mult_kernel(%arg0: i32, %arg1: i32, %arg2: memref<8x128xf32, #tpu.memory_space<vmem>>, %arg3: memref<8x128xf32, #tpu.memory_space<vmem>>, %arg4: memref<8x128x128xf32, #tpu.memory_space<vmem>>, %arg5: memref<128x128xf32, #tpu.memory_space<vmem>>, %arg6: memref<128x128xf32, #tpu.memory_space<vmem>>, %arg7: memref<1x128xf32, #tpu.memory_space<vmem>>, %arg8: memref<8x128xf32, #tpu.memory_space<vmem>>, %arg9: memref<8x128xf32, #tpu.memory_space<vmem>>) attributes {dimension_semantics = [#tpu.dimension_semantics<parallel>, #tpu.dimension_semantics<parallel>], iteration_bounds = array<i64: 1, 1>, scalar_prefetch = 0 : i64, scratch_operands = 1 : i64, tpu.core_type = #tpu.core_type<tc>, window_params = [{transform_indices = @transform_0, window_bounds = array<i64: 8, 128>}, {transform_indices = @transform_1, window_bounds = array<i64: 8, 128>}, {transform_indices = @transform_2, window_bounds = array<i64: 8, 128, 128>}, {transform_indices = @transform_3, window_bounds = array<i64: 128, 128>}, {transform_indices = @transform_4, window_bounds = array<i64: 128, 128>}, {transform_indices = @transform_5, window_bounds = array<i64: 1, 128>}, {transform_indices = @transform_6, window_bounds = array<i64: 8, 128>}]} {
    %c0 = arith.constant 0 : index
    %c0_0 = arith.constant 0 : index
    %0 = vector.load %arg2[%c0, %c0_0] : memref<8x128xf32, #tpu.memory_space<vmem>>, vector<8x128xf32>
    %c0_1 = arith.constant 0 : index
    %c0_2 = arith.constant 0 : index
    %1 = vector.load %arg3[%c0_1, %c0_2] : memref<8x128xf32, #tpu.memory_space<vmem>>, vector<8x128xf32>
    %c0_3 = arith.constant 0 : index
    %c0_4 = arith.constant 0 : index
    %2 = vector.load %arg7[%c0_3, %c0_4] : memref<1x128xf32, #tpu.memory_space<vmem>>, vector<1x128xf32>
    %3 = vector.shape_cast %2 : vector<1x128xf32> to vector<1x128xf32>
    %4 = vector.broadcast %3 : vector<1x128xf32> to vector<8x128xf32>
    %c0_5 = arith.constant 0 : index
    %c0_6 = arith.constant 0 : index
    %5 = vector.load %arg9[%c0_5, %c0_6] : memref<8x128xf32, #tpu.memory_space<vmem>>, vector<8x128xf32>
    tpu.vector_store %arg9[%c0_5, %c0_6], %4 {strides = array<i32>} : memref<8x128xf32, #tpu.memory_space<vmem>>, vector<8x128xf32>,
    %c0_7 = arith.constant 0 : index
    %c0_8 = arith.constant 0 : index
    %6 = vector.load %arg9[%c0_7, %c0_8] : memref<8x128xf32, #tpu.memory_space<vmem>>, vector<8x128xf32>
    %c0_9 = arith.constant 0 : index
    %c0_10 = arith.constant 0 : index
    %7 = vector.load %arg5[%c0_9, %c0_10] : memref<128x128xf32, #tpu.memory_space<vmem>>, vector<128x128xf32>
    %cst = arith.constant dense<0.000000e+00> : vector<8x128xf32>
    %8 = tpu.matmul %0, %7, %cst {dimension_numbers = #tpu.dot_dimension_numbers<[1], [0], [0], [1], [0, 0, 1, 1], [], []>} : vector<8x128xf32>, vector<128x128xf32>, vector<8x128xf32> -> vector<8x128xf32>
    %9 = arith.addf %6, %8 : vector<8x128xf32>
    %c0_11 = arith.constant 0 : index
    %c0_12 = arith.constant 0 : index
    %10 = vector.load %arg9[%c0_11, %c0_12] : memref<8x128xf32, #tpu.memory_space<vmem>>, vector<8x128xf32>
    tpu.vector_store %arg9[%c0_11, %c0_12], %9 {strides = array<i32>} : memref<8x128xf32, #tpu.memory_space<vmem>>, vector<8x128xf32>,
    %c0_13 = arith.constant 0 : index
    %c0_14 = arith.constant 0 : index
    %11 = vector.load %arg9[%c0_13, %c0_14] : memref<8x128xf32, #tpu.memory_space<vmem>>, vector<8x128xf32>
    %c0_15 = arith.constant 0 : index
    %c0_16 = arith.constant 0 : index
    %12 = vector.load %arg6[%c0_15, %c0_16] : memref<128x128xf32, #tpu.memory_space<vmem>>, vector<128x128xf32>
    %cst_17 = arith.constant dense<0.000000e+00> : vector<8x128xf32>
    %13 = tpu.matmul %1, %12, %cst_17 {dimension_numbers = #tpu.dot_dimension_numbers<[1], [0], [0], [1], [0, 0, 1, 1], [], []>} : vector<8x128xf32>, vector<128x128xf32>, vector<8x128xf32> -> vector<8x128xf32>
    %14 = arith.addf %11, %13 : vector<8x128xf32>
    %c0_18 = arith.constant 0 : index
    %c0_19 = arith.constant 0 : index
    %15 = vector.load %arg9[%c0_18, %c0_19] : memref<8x128xf32, #tpu.memory_space<vmem>>, vector<8x128xf32>
    tpu.vector_store %arg9[%c0_18, %c0_19], %14 {strides = array<i32>} : memref<8x128xf32, #tpu.memory_space<vmem>>, vector<8x128xf32>,
    %16 = vector.extract_strided_slice %1 {offsets = [0, 0], sizes = [8, 1], strides = [1, 1]} : vector<8x128xf32> to vector<8x1xf32>
    %17 = vector.broadcast %16 : vector<8x1xf32> to vector<8x128xf32>
    %18 = arith.mulf %17, %0 : vector<8x128xf32>
    %c0_20 = arith.constant 0 : index
    %c0_21 = arith.constant 0 : index
    %19 = vector.load %arg9[%c0_20, %c0_21] : memref<8x128xf32, #tpu.memory_space<vmem>>, vector<8x128xf32>
    %c0_22 = arith.constant 0 : index
    %c0_23 = arith.constant 0 : index
    %c0_24 = arith.constant 0 : index
    %20 = vector.load %arg4[%c0_22, %c0_23, %c0_24] : memref<8x128x128xf32, #tpu.memory_space<vmem>>, vector<1x128x128xf32>
    %21 = vector.shape_cast %20 : vector<1x128x128xf32> to vector<128x128xf32>
    %cst_25 = arith.constant dense<0.000000e+00> : vector<8x128xf32>
    %22 = tpu.matmul %18, %21, %cst_25 {dimension_numbers = #tpu.dot_dimension_numbers<[1], [0], [0], [1], [0, 0, 1, 1], [], []>} : vector<8x128xf32>, vector<128x128xf32>, vector<8x128xf32> -> vector<8x128xf32>
    %23 = arith.addf %19, %22 : vector<8x128xf32>
    %c0_26 = arith.constant 0 : index
    %c0_27 = arith.constant 0 : index
    %24 = vector.load %arg9[%c0_26, %c0_27] : memref<8x128xf32, #tpu.memory_space<vmem>>, vector<8x128xf32>
    tpu.vector_store %arg9[%c0_26, %c0_27], %23 {strides = array<i32>} : memref<8x128xf32, #tpu.memory_space<vmem>>, vector<8x128xf32>,
    %25 = vector.extract_strided_slice %1 {offsets = [0, 1], sizes = [8, 1], strides = [1, 1]} : vector<8x128xf32> to vector<8x1xf32>
    %26 = vector.broadcast %25 : vector<8x1xf32> to vector<8x128xf32>
    %27 = arith.mulf %26, %0 : vector<8x128xf32>
    %c0_28 = arith.constant 0 : index
    %c0_29 = arith.constant 0 : index
    %28 = vector.load %arg9[%c0_28, %c0_29] : memref<8x128xf32, #tpu.memory_space<vmem>>, vector<8x128xf32>
    %c1 = arith.constant 1 : index
    %c0_30 = arith.constant 0 : index
    %c0_31 = arith.constant 0 : index
    %29 = vector.load %arg4[%c1, %c0_30, %c0_31] : memref<8x128x128xf32, #tpu.memory_space<vmem>>, vector<1x128x128xf32>
    %30 = vector.shape_cast %29 : vector<1x128x128xf32> to vector<128x128xf32>
    %cst_32 = arith.constant dense<0.000000e+00> : vector<8x128xf32>
    %31 = tpu.matmul %27, %30, %cst_32 {dimension_numbers = #tpu.dot_dimension_numbers<[1], [0], [0], [1], [0, 0, 1, 1], [], []>} : vector<8x128xf32>, vector<128x128xf32>, vector<8x128xf32> -> vector<8x128xf32>
    %32 = arith.addf %28, %31 : vector<8x128xf32>
    %c0_33 = arith.constant 0 : index
    %c0_34 = arith.constant 0 : index
    %33 = vector.load %arg9[%c0_33, %c0_34] : memref<8x128xf32, #tpu.memory_space<vmem>>, vector<8x128xf32>
    tpu.vector_store %arg9[%c0_33, %c0_34], %32 {strides = array<i32>} : memref<8x128xf32, #tpu.memory_space<vmem>>, vector<8x128xf32>,
    %34 = vector.extract_strided_slice %1 {offsets = [0, 2], sizes = [8, 1], strides = [1, 1]} : vector<8x128xf32> to vector<8x1xf32>
    %35 = vector.broadcast %34 : vector<8x1xf32> to vector<8x128xf32>
    %36 = arith.mulf %35, %0 : vector<8x128xf32>
    %c0_35 = arith.constant 0 : index
    %c0_36 = arith.constant 0 : index
    %37 = vector.load %arg9[%c0_35, %c0_36] : memref<8x128xf32, #tpu.memory_space<vmem>>, vector<8x128xf32>
    %c2 = arith.constant 2 : index
    %c0_37 = arith.constant 0 : index
    %c0_38 = arith.constant 0 : index
    %38 = vector.load %arg4[%c2, %c0_37, %c0_38] : memref<8x128x128xf32, #tpu.memory_space<vmem>>, vector<1x128x128xf32>
    %39 = vector.shape_cast %38 : vector<1x128x128xf32> to vector<128x128xf32>
    %cst_39 = arith.constant dense<0.000000e+00> : vector<8x128xf32>
    %40 = tpu.matmul %36, %39, %cst_39 {dimension_numbers = #tpu.dot_dimension_numbers<[1], [0], [0], [1], [0, 0, 1, 1], [], []>} : vector<8x128xf32>, vector<128x128xf32>, vector<8x128xf32> -> vector<8x128xf32>
    %41 = arith.addf %37, %40 : vector<8x128xf32>
    %c0_40 = arith.constant 0 : index
    %c0_41 = arith.constant 0 : index
    %42 = vector.load %arg9[%c0_40, %c0_41] : memref<8x128xf32, #tpu.memory_space<vmem>>, vector<8x128xf32>
    tpu.vector_store %arg9[%c0_40, %c0_41], %41 {strides = array<i32>} : memref<8x128xf32, #tpu.memory_space<vmem>>, vector<8x128xf32>,
    %43 = vector.extract_strided_slice %1 {offsets = [0, 3], sizes = [8, 1], strides = [1, 1]} : vector<8x128xf32> to vector<8x1xf32>
    %44 = vector.broadcast %43 : vector<8x1xf32> to vector<8x128xf32>
    %45 = arith.mulf %44, %0 : vector<8x128xf32>
    %c0_42 = arith.constant 0 : index
    %c0_43 = arith.constant 0 : index
    %46 = vector.load %arg9[%c0_42, %c0_43] : memref<8x128xf32, #tpu.memory_space<vmem>>, vector<8x128xf32>
    %c3 = arith.constant 3 : index
    %c0_44 = arith.constant 0 : index
    %c0_45 = arith.constant 0 : index
    %47 = vector.load %arg4[%c3, %c0_44, %c0_45] : memref<8x128x128xf32, #tpu.memory_space<vmem>>, vector<1x128x128xf32>
    %48 = vector.shape_cast %47 : vector<1x128x128xf32> to vector<128x128xf32>
    %cst_46 = arith.constant dense<0.000000e+00> : vector<8x128xf32>
    %49 = tpu.matmul %45, %48, %cst_46 {dimension_numbers = #tpu.dot_dimension_numbers<[1], [0], [0], [1], [0, 0, 1, 1], [], []>} : vector<8x128xf32>, vector<128x128xf32>, vector<8x128xf32> -> vector<8x128xf32>
    %50 = arith.addf %46, %49 : vector<8x128xf32>
    %c0_47 = arith.constant 0 : index
    %c0_48 = arith.constant 0 : index
    %51 = vector.load %arg9[%c0_47, %c0_48] : memref<8x128xf32, #tpu.memory_space<vmem>>, vector<8x128xf32>
    tpu.vector_store %arg9[%c0_47, %c0_48], %50 {strides = array<i32>} : memref<8x128xf32, #tpu.memory_space<vmem>>, vector<8x128xf32>,
    %52 = vector.extract_strided_slice %1 {offsets = [0, 4], sizes = [8, 1], strides = [1, 1]} : vector<8x128xf32> to vector<8x1xf32>
    %53 = vector.broadcast %52 : vector<8x1xf32> to vector<8x128xf32>
    %54 = arith.mulf %53, %0 : vector<8x128xf32>
    %c0_49 = arith.constant 0 : index
    %c0_50 = arith.constant 0 : index
    %55 = vector.load %arg9[%c0_49, %c0_50] : memref<8x128xf32, #tpu.memory_space<vmem>>, vector<8x128xf32>
    %c4 = arith.constant 4 : index
    %c0_51 = arith.constant 0 : index
    %c0_52 = arith.constant 0 : index
    %56 = vector.load %arg4[%c4, %c0_51, %c0_52] : memref<8x128x128xf32, #tpu.memory_space<vmem>>, vector<1x128x128xf32>
    %57 = vector.shape_cast %56 : vector<1x128x128xf32> to vector<128x128xf32>
    %cst_53 = arith.constant dense<0.000000e+00> : vector<8x128xf32>
    %58 = tpu.matmul %54, %57, %cst_53 {dimension_numbers = #tpu.dot_dimension_numbers<[1], [0], [0], [1], [0, 0, 1, 1], [], []>} : vector<8x128xf32>, vector<128x128xf32>, vector<8x128xf32> -> vector<8x128xf32>
    %59 = arith.addf %55, %58 : vector<8x128xf32>
    %c0_54 = arith.constant 0 : index
    %c0_55 = arith.constant 0 : index
    %60 = vector.load %arg9[%c0_54, %c0_55] : memref<8x128xf32, #tpu.memory_space<vmem>>, vector<8x128xf32>
    tpu.vector_store %arg9[%c0_54, %c0_55], %59 {strides = array<i32>} : memref<8x128xf32, #tpu.memory_space<vmem>>, vector<8x128xf32>,
    %61 = vector.extract_strided_slice %1 {offsets = [0, 5], sizes = [8, 1], strides = [1, 1]} : vector<8x128xf32> to vector<8x1xf32>
    %62 = vector.broadcast %61 : vector<8x1xf32> to vector<8x128xf32>
    %63 = arith.mulf %62, %0 : vector<8x128xf32>
    %c0_56 = arith.constant 0 : index
    %c0_57 = arith.constant 0 : index
    %64 = vector.load %arg9[%c0_56, %c0_57] : memref<8x128xf32, #tpu.memory_space<vmem>>, vector<8x128xf32>
    %c5 = arith.constant 5 : index
    %c0_58 = arith.constant 0 : index
    %c0_59 = arith.constant 0 : index
    %65 = vector.load %arg4[%c5, %c0_58, %c0_59] : memref<8x128x128xf32, #tpu.memory_space<vmem>>, vector<1x128x128xf32>
    %66 = vector.shape_cast %65 : vector<1x128x128xf32> to vector<128x128xf32>
    %cst_60 = arith.constant dense<0.000000e+00> : vector<8x128xf32>
    %67 = tpu.matmul %63, %66, %cst_60 {dimension_numbers = #tpu.dot_dimension_numbers<[1], [0], [0], [1], [0, 0, 1, 1], [], []>} : vector<8x128xf32>, vector<128x128xf32>, vector<8x128xf32> -> vector<8x128xf32>
    %68 = arith.addf %64, %67 : vector<8x128xf32>
    %c0_61 = arith.constant 0 : index
    %c0_62 = arith.constant 0 : index
    %69 = vector.load %arg9[%c0_61, %c0_62] : memref<8x128xf32, #tpu.memory_space<vmem>>, vector<8x128xf32>
    tpu.vector_store %arg9[%c0_61, %c0_62], %68 {strides = array<i32>} : memref<8x128xf32, #tpu.memory_space<vmem>>, vector<8x128xf32>,
    %70 = vector.extract_strided_slice %1 {offsets = [0, 6], sizes = [8, 1], strides = [1, 1]} : vector<8x128xf32> to vector<8x1xf32>
    %71 = vector.broadcast %70 : vector<8x1xf32> to vector<8x128xf32>
    %72 = arith.mulf %71, %0 : vector<8x128xf32>
    %c0_63 = arith.constant 0 : index
    %c0_64 = arith.constant 0 : index
    %73 = vector.load %arg9[%c0_63, %c0_64] : memref<8x128xf32, #tpu.memory_space<vmem>>, vector<8x128xf32>
    %c6 = arith.constant 6 : index
    %c0_65 = arith.constant 0 : index
    %c0_66 = arith.constant 0 : index
    %74 = vector.load %arg4[%c6, %c0_65, %c0_66] : memref<8x128x128xf32, #tpu.memory_space<vmem>>, vector<1x128x128xf32>
    %75 = vector.shape_cast %74 : vector<1x128x128xf32> to vector<128x128xf32>
    %cst_67 = arith.constant dense<0.000000e+00> : vector<8x128xf32>
    %76 = tpu.matmul %72, %75, %cst_67 {dimension_numbers = #tpu.dot_dimension_numbers<[1], [0], [0], [1], [0, 0, 1, 1], [], []>} : vector<8x128xf32>, vector<128x128xf32>, vector<8x128xf32> -> vector<8x128xf32>
    %77 = arith.addf %73, %76 : vector<8x128xf32>
    %c0_68 = arith.constant 0 : index
    %c0_69 = arith.constant 0 : index
    %78 = vector.load %arg9[%c0_68, %c0_69] : memref<8x128xf32, #tpu.memory_space<vmem>>, vector<8x128xf32>
    tpu.vector_store %arg9[%c0_68, %c0_69], %77 {strides = array<i32>} : memref<8x128xf32, #tpu.memory_space<vmem>>, vector<8x128xf32>,
    %79 = vector.extract_strided_slice %1 {offsets = [0, 7], sizes = [8, 1], strides = [1, 1]} : vector<8x128xf32> to vector<8x1xf32>
    %80 = vector.broadcast %79 : vector<8x1xf32> to vector<8x128xf32>
    %81 = arith.mulf %80, %0 : vector<8x128xf32>
    %c0_70 = arith.constant 0 : index
    %c0_71 = arith.constant 0 : index
    %82 = vector.load %arg9[%c0_70, %c0_71] : memref<8x128xf32, #tpu.memory_space<vmem>>, vector<8x128xf32>
    %c7 = arith.constant 7 : index
    %c0_72 = arith.constant 0 : index
    %c0_73 = arith.constant 0 : index
    %83 = vector.load %arg4[%c7, %c0_72, %c0_73] : memref<8x128x128xf32, #tpu.memory_space<vmem>>, vector<1x128x128xf32>
    %84 = vector.shape_cast %83 : vector<1x128x128xf32> to vector<128x128xf32>
    %cst_74 = arith.constant dense<0.000000e+00> : vector<8x128xf32>
    %85 = tpu.matmul %81, %84, %cst_74 {dimension_numbers = #tpu.dot_dimension_numbers<[1], [0], [0], [1], [0, 0, 1, 1], [], []>} : vector<8x128xf32>, vector<128x128xf32>, vector<8x128xf32> -> vector<8x128xf32>
    %86 = arith.addf %82, %85 : vector<8x128xf32>
    %c0_75 = arith.constant 0 : index
    %c0_76 = arith.constant 0 : index
    %87 = vector.load %arg9[%c0_75, %c0_76] : memref<8x128xf32, #tpu.memory_space<vmem>>, vector<8x128xf32>
    tpu.vector_store %arg9[%c0_75, %c0_76], %86 {strides = array<i32>} : memref<8x128xf32, #tpu.memory_space<vmem>>, vector<8x128xf32>,
    %c0_77 = arith.constant 0 : index
    %c0_78 = arith.constant 0 : index
    %88 = vector.load %arg9[%c0_77, %c0_78] : memref<8x128xf32, #tpu.memory_space<vmem>>, vector<8x128xf32>
    %c0_79 = arith.constant 0 : index
    %c0_80 = arith.constant 0 : index
    %89 = vector.load %arg8[%c0_79, %c0_80] : memref<8x128xf32, #tpu.memory_space<vmem>>, vector<8x128xf32>
    tpu.vector_store %arg8[%c0_79, %c0_80], %88 {strides = array<i32>} : memref<8x128xf32, #tpu.memory_space<vmem>>, vector<8x128xf32>,
    return
  }
  func.func @transform_0(%arg0: i32, %arg1: i32) -> (i32, i32) {
    %c0_i32 = arith.constant 0 : i32
    %c0_i32_0 = arith.constant 0 : i32
    return %arg1, %c0_i32 : i32, i32
  }
  func.func @transform_1(%arg0: i32, %arg1: i32) -> (i32, i32) {
    %c0_i32 = arith.constant 0 : i32
    %c0_i32_0 = arith.constant 0 : i32
    return %arg1, %c0_i32 : i32, i32
  }
  func.func @transform_2(%arg0: i32, %arg1: i32) -> (i32, i32, i32) {
    %c0_i32 = arith.constant 0 : i32
    %c0_i32_0 = arith.constant 0 : i32
    %c0_i32_1 = arith.constant 0 : i32
    return %c0_i32, %c0_i32_0, %arg0 : i32, i32, i32
  }
  func.func @transform_3(%arg0: i32, %arg1: i32) -> (i32, i32) {
    %c0_i32 = arith.constant 0 : i32
    %c0_i32_0 = arith.constant 0 : i32
    return %c0_i32, %arg0 : i32, i32
  }
  func.func @transform_4(%arg0: i32, %arg1: i32) -> (i32, i32) {
    %c0_i32 = arith.constant 0 : i32
    %c0_i32_0 = arith.constant 0 : i32
    return %c0_i32, %arg0 : i32, i32
  }
  func.func @transform_5(%arg0: i32, %arg1: i32) -> (i32, i32) {
    %c0_i32 = arith.constant 0 : i32
    %c0_i32_0 = arith.constant 0 : i32
    return %c0_i32, %arg0 : i32, i32
  }
  func.func @transform_6(%arg0: i32, %arg1: i32) -> (i32, i32) {
    %c0_i32 = arith.constant 0 : i32
    return %arg1, %arg0 : i32, i32
  }
}

</mosaic_0001>

<llo_original>
// kernel: tpu_custom_call.1
$region0: #{tpu_custom_call.1}
  #allocation0 [shape = 'u32[]', space=smem, size = 0x4, offset = 0x4, fixed_abs, tag = 'smem constant byte address 0x4 - core index']
  #allocation1 [shape = 'u32[144,128]{1,0:T(1,128)}', space=vmem, size = 0x12000, scoped, tag = 'internal scratch']
  #allocation2 [shape = 'f32[8,128]{1,0:T(8,128)}', space=vmem, size = 0x1000, scoped, tag = 'scratch operand']
  %s0 = inlined_call_operand.hbm [shape: f32[8,128], index: 0, kind: input, shape index: {}]
  %s1 = inlined_call_operand.hbm [shape: f32[8,128], index: 1, kind: input, shape index: {}]
  %s2 = inlined_call_operand.hbm [shape: f32[8,128,128], index: 2, kind: input, shape index: {}]
  %s3 = inlined_call_operand.hbm [shape: f32[128,128], index: 3, kind: input, shape index: {}]
  %s4 = inlined_call_operand.hbm [shape: f32[128,128], index: 4, kind: input, shape index: {}]
  %s5 = inlined_call_operand.vmem [shape: f32[1,128], index: 5, kind: input, shape index: {}]
  %s6 = inlined_call_operand.hbm [shape: f32[8,128], index: 6, kind: output, shape index: {}]
  %s7 = sld [smem:[#allocation0]]
  $region54: #{tpu_custom_call.1} parent=0
    _
  %s9 = ssub.s32 1, %s7
  %s10 = scalar_select 0, %s9, %s7
  $region1: #{tpu_custom_call.1} parent=0
    #allocation3 [shape = 'u8[4096]{0}', space=vmem, size = 0x1000, scoped, tag = 'input window, operand 0, single buffered']
    #allocation4 [shape = 's32[1]{0}', space=sflag, size = 0x4, scoped, tag = 'scoped memory for tpu_custom_call.1']
    #allocation5 [shape = 's32[1]{0}', space=sflag, size = 0x4, scoped, tag = 'scoped memory for tpu_custom_call.1']
    #allocation6 [shape = 'u8[4096]{0}', space=vmem, size = 0x1000, scoped, tag = 'input window, operand 1, single buffered']
    #allocation7 [shape = 's32[1]{0}', space=sflag, size = 0x4, scoped, tag = 'scoped memory for tpu_custom_call.1']
    #allocation8 [shape = 'u8[524288]{0}', space=vmem, size = 0x80000, scoped, tag = 'input window, operand 2, single buffered']
    #allocation9 [shape = 'u8[65536]{0}', space=vmem, size = 0x10000, scoped, tag = 'input window, operand 3, single buffered']
    #allocation10 [shape = 's32[1]{0}', space=sflag, size = 0x4, scoped, tag = 'scoped memory for tpu_custom_call.1']
    #allocation11 [shape = 'u8[65536]{0}', space=vmem, size = 0x10000, scoped, tag = 'input window, operand 4, single buffered']
    #allocation12 [shape = 'u8[4096]{0}', space=vmem, size = 0x1000, scoped, tag = 'output window, operand 0, single buffered']
    %11 = vsyncpa [#allocation4], 0
    %12 = vsyncpa [#allocation7], 0
    %13 = vsyncpa [#allocation10], 0
    %14 = vsyncpa [#allocation5], 0
    // Predicated region
    $region2: #{tpu_custom_call.1} parent=1 // pred_check
      _
    $region3: #{tpu_custom_call.1} parent=1 // pred_check_branch
      %16 = sbr.rel (0) target = $region5
    $region4: #{tpu_custom_call.1} parent=1 // pred_region
      %s18 = ssub.s32 128, 128
      %19 = vsyncadd [#allocation4], %s18
      %s21 = sshll.u32 [#allocation3], 4
      %s22 = int_to_ptr.vmem [resolvable:$true] %s21
      %24 = dma.hbm_to_vmem [thread:$0]  %s0, 128, %s22, [#allocation4]
    $region5: #{tpu_custom_call.1} parent=1 // pred_fallthru
      _
    // Predicated region
    $region6: #{tpu_custom_call.1} parent=1 // pred_check
      _
    $region7: #{tpu_custom_call.1} parent=1 // pred_check_branch
      %26 = sbr.rel (0) target = $region9
    $region8: #{tpu_custom_call.1} parent=1 // pred_region
      %s28 = ssub.s32 128, 128
      %29 = vsyncadd [#allocation7], %s28
      %s31 = sshll.u32 [#allocation6], 4
      %s32 = int_to_ptr.vmem [resolvable:$true] %s31
      %34 = dma.hbm_to_vmem [thread:$0]  %s1, 128, %s32, [#allocation7]
    $region9: #{tpu_custom_call.1} parent=1 // pred_fallthru
      _
    // Predicated region
    $region10: #{tpu_custom_call.1} parent=1 // pred_check
      _
    $region11: #{tpu_custom_call.1} parent=1 // pred_check_branch
      %36 = sbr.rel (0) target = $region13
    $region12: #{tpu_custom_call.1} parent=1 // pred_region
      %s38 = ssub.s32 16384, 16384
      %39 = vsyncadd [#allocation7], %s38
      %s40 = sshll.u32 [#allocation8], 4
      %s41 = int_to_ptr.vmem [resolvable:$true] %s40
      %46 = dma.hbm_to_vmem [thread:$0]  %s2, 16384, %s41, [#allocation7], 128, 128, 8
    $region13: #{tpu_custom_call.1} parent=1 // pred_fallthru
      _
    // Predicated region
    $region14: #{tpu_custom_call.1} parent=1 // pred_check
      _
    $region15: #{tpu_custom_call.1} parent=1 // pred_check_branch
      %48 = sbr.rel (0) target = $region17
    $region16: #{tpu_custom_call.1} parent=1 // pred_region
      %s50 = ssub.s32 2048, 2048
      %51 = vsyncadd [#allocation10], %s50
      %s52 = sshll.u32 [#allocation9], 4
      %s53 = int_to_ptr.vmem [resolvable:$true] %s52
      %58 = dma.hbm_to_vmem [thread:$0]  %s3, 2048, %s53, [#allocation10], 128, 128, 8
    $region17: #{tpu_custom_call.1} parent=1 // pred_fallthru
      _
    // Predicated region
    $region18: #{tpu_custom_call.1} parent=1 // pred_check
      _
    $region19: #{tpu_custom_call.1} parent=1 // pred_check_branch
      %60 = sbr.rel (0) target = $region21
    $region20: #{tpu_custom_call.1} parent=1 // pred_region
      %s62 = ssub.s32 2048, 2048
      %63 = vsyncadd [#allocation10], %s62
      %s64 = sshll.u32 [#allocation11], 4
      %s65 = int_to_ptr.vmem [resolvable:$true] %s64
      %70 = dma.hbm_to_vmem [thread:$0]  %s4, 2048, %s65, [#allocation10], 128, 128, 8
    $region21: #{tpu_custom_call.1} parent=1 // pred_fallthru
      _
    // Predicated region
    $region22: #{tpu_custom_call.1} parent=1 // pred_check
      _
    $region23: #{tpu_custom_call.1} parent=1 // pred_check_branch
      %72 = sbr.rel (0) target = $region25
    $region24: #{tpu_custom_call.1} parent=1 // pred_region
      _
    $region25: #{tpu_custom_call.1} parent=1 // pred_fallthru
      _
    // Predicated region
    $region26: #{tpu_custom_call.1} parent=1 // pred_check
      _
    $region27: #{tpu_custom_call.1} parent=1 // pred_check_branch
      %74 = sbr.rel (0) target = $region29
    $region28: #{tpu_custom_call.1} parent=1 // pred_region
      %75 = dma.done [#allocation4], 128
    $region29: #{tpu_custom_call.1} parent=1 // pred_fallthru
      _
    // Predicated region
    $region30: #{tpu_custom_call.1} parent=1 // pred_check
      _
    $region31: #{tpu_custom_call.1} parent=1 // pred_check_branch
      %77 = sbr.rel (0) target = $region33
    $region32: #{tpu_custom_call.1} parent=1 // pred_region
      %78 = dma.done [#allocation7], 128
    $region33: #{tpu_custom_call.1} parent=1 // pred_fallthru
      _
    // Predicated region
    $region34: #{tpu_custom_call.1} parent=1 // pred_check
      _
    $region35: #{tpu_custom_call.1} parent=1 // pred_check_branch
      %80 = sbr.rel (0) target = $region37
    $region36: #{tpu_custom_call.1} parent=1 // pred_region
      %81 = dma.done [#allocation7], 16384
    $region37: #{tpu_custom_call.1} parent=1 // pred_fallthru
      _
    // Predicated region
    $region38: #{tpu_custom_call.1} parent=1 // pred_check
      _
    $region39: #{tpu_custom_call.1} parent=1 // pred_check_branch
      %83 = sbr.rel (0) target = $region41
    $region40: #{tpu_custom_call.1} parent=1 // pred_region
      %84 = dma.done [#allocation10], 2048
    $region41: #{tpu_custom_call.1} parent=1 // pred_fallthru
      _
    // Predicated region
    $region42: #{tpu_custom_call.1} parent=1 // pred_check
      _
    $region43: #{tpu_custom_call.1} parent=1 // pred_check_branch
      %86 = sbr.rel (0) target = $region45
    $region44: #{tpu_custom_call.1} parent=1 // pred_region
      %87 = dma.done [#allocation10], 2048
    $region45: #{tpu_custom_call.1} parent=1 // pred_fallthru
      _
    %v88 = vld [vmem:[#allocation3] sm:$0xff]
    %v89 = vld [vmem:[#allocation6] sm:$0xff]
    %v90 = vld [vmem:[%s5] sm:$0x1]
    %v92 = vlaneseq
    %v93 = vshrl.u32 %v92, 7
    %v94 = vsub.s32 0, %v93
    %v95 = vrot.slane %v90, %v94
    %97 = vst [vmem:[#allocation2] sm:$0xff] %v95
    %v98 = vld [vmem:[#allocation2] sm:$0xff]
    %v99 = vld [vmem:[#allocation9] sm:$0xff]
    %v100 = vld [vmem:[#allocation9 + $0x8] sm:$0xff]
    %v101 = vld [vmem:[#allocation9 + $0x10] sm:$0xff]
    %v102 = vld [vmem:[#allocation9 + $0x18] sm:$0xff]
    %v103 = vld [vmem:[#allocation9 + $0x20] sm:$0xff]
    %v104 = vld [vmem:[#allocation9 + $0x28] sm:$0xff]
    %v105 = vld [vmem:[#allocation9 + $0x30] sm:$0xff]
    %v106 = vld [vmem:[#allocation9 + $0x38] sm:$0xff]
    %v107 = vld [vmem:[#allocation9 + $0x40] sm:$0xff]
    %v108 = vld [vmem:[#allocation9 + $0x48] sm:$0xff]
    %v109 = vld [vmem:[#allocation9 + $0x50] sm:$0xff]
    %v110 = vld [vmem:[#allocation9 + $0x58] sm:$0xff]
    %v111 = vld [vmem:[#allocation9 + $0x60] sm:$0xff]
    %v112 = vld [vmem:[#allocation9 + $0x68] sm:$0xff]
    %v113 = vld [vmem:[#allocation9 + $0x70] sm:$0xff]
    %v114 = vld [vmem:[#allocation9 + $0x78] sm:$0xff]
    %115 = vmatprep.subr.mxu0 0.0
    %116 = vmatpush1.msra.mxu0 %v99
    %117 = vmatprep.subr.mxu0 0.0
    %118 = vmatpush1.msra.mxu0 %v100
    %119 = vmatprep.subr.mxu0 0.0
    %120 = vmatpush1.msra.mxu0 %v101
    %121 = vmatprep.subr.mxu0 0.0
    %122 = vmatpush1.msra.mxu0 %v102
    %123 = vmatprep.subr.mxu0 0.0
    %124 = vmatpush1.msra.mxu0 %v103
    %125 = vmatprep.subr.mxu0 0.0
    %126 = vmatpush1.msra.mxu0 %v104
    %127 = vmatprep.subr.mxu0 0.0
    %128 = vmatpush1.msra.mxu0 %v105
    %129 = vmatprep.subr.mxu0 0.0
    %130 = vmatpush1.msra.mxu0 %v106
    %131 = vmatprep.subr.mxu0 0.0
    %132 = vmatpush1.msra.mxu0 %v107
    %133 = vmatprep.subr.mxu0 0.0
    %134 = vmatpush1.msra.mxu0 %v108
    %135 = vmatprep.subr.mxu0 0.0
    %136 = vmatpush1.msra.mxu0 %v109
    %137 = vmatprep.subr.mxu0 0.0
    %138 = vmatpush1.msra.mxu0 %v110
    %139 = vmatprep.subr.mxu0 0.0
    %140 = vmatpush1.msra.mxu0 %v111
    %141 = vmatprep.subr.mxu0 0.0
    %142 = vmatpush1.msra.mxu0 %v112
    %143 = vmatprep.subr.mxu0 0.0
    %144 = vmatpush1.msra.mxu0 %v113
    %145 = vmatprep.subr.mxu0 0.0
    %146 = vmatpush1.msra.mxu0 %v114
    %147 = vmatprep.subr.mxu0 0.0
    %148 = vmatpush1.msra.mxu0 0.0
    %149 = vmatprep.subr.mxu0 0.0
    %150 = vmatpush1.msra.mxu0 0.0
    %151 = vmatprep.subr.mxu0 0.0
    %152 = vmatpush1.msra.mxu0 0.0
    %153 = vmatprep.subr.mxu0 0.0
    %154 = vmatpush1.msra.mxu0 0.0
    %155 = vmatprep.subr.mxu0 0.0
    %156 = vmatpush1.msra.mxu0 0.0
    %157 = vmatprep.subr.mxu0 0.0
    %158 = vmatpush1.msra.mxu0 0.0
    %159 = vmatprep.subr.mxu0 0.0
    %160 = vmatpush1.msra.mxu0 0.0
    %161 = vmatprep.subr.mxu0 0.0
    %162 = vmatpush1.msra.mxu0 0.0
    %163 = vmatprep.subr.mxu0 0.0
    %164 = vmatpush1.msra.mxu0 0.0
    %165 = vmatprep.subr.mxu0 0.0
    %166 = vmatpush1.msra.mxu0 0.0
    %167 = vmatprep.subr.mxu0 0.0
    %168 = vmatpush1.msra.mxu0 0.0
    %169 = vmatprep.subr.mxu0 0.0
    %170 = vmatpush1.msra.mxu0 0.0
    %171 = vmatprep.subr.mxu0 0.0
    %172 = vmatpush1.msra.mxu0 0.0
    %173 = vmatprep.subr.mxu0 0.0
    %174 = vmatpush1.msra.mxu0 0.0
    %175 = vmatprep.subr.mxu0 0.0
    %176 = vmatpush1.msra.mxu0 0.0
    %177 = vmatprep.subr.mxu0 0.0
    %178 = vmatpush1.msra.mxu0 0.0
    %179 = vmatprep.mubr.f32.mxu0 0.0
    %180 = vmatmul.mubr.f32.gmra.mrb[0].mxu0 %v88
    %v181 = vpop.f32.mrb[0].mxu0
    %v182 = vadd.f32 0.0, %v181
    %v183 = vpop.f32.mrb[0].mxu0
    %184 = vdwg.mxu0
    %v185 = vadd.f32 %v98, %v182
    %186 = vst [vmem:[#allocation2] sm:$0xff] %v185
    %v187 = vld [vmem:[#allocation2] sm:$0xff]
    %v188 = vld [vmem:[#allocation11] sm:$0xff]
    %v189 = vld [vmem:[#allocation11 + $0x8] sm:$0xff]
    %v190 = vld [vmem:[#allocation11 + $0x10] sm:$0xff]
    %v191 = vld [vmem:[#allocation11 + $0x18] sm:$0xff]
    %v192 = vld [vmem:[#allocation11 + $0x20] sm:$0xff]
    %v193 = vld [vmem:[#allocation11 + $0x28] sm:$0xff]
    %v194 = vld [vmem:[#allocation11 + $0x30] sm:$0xff]
    %v195 = vld [vmem:[#allocation11 + $0x38] sm:$0xff]
    %v196 = vld [vmem:[#allocation11 + $0x40] sm:$0xff]
    %v197 = vld [vmem:[#allocation11 + $0x48] sm:$0xff]
    %v198 = vld [vmem:[#allocation11 + $0x50] sm:$0xff]
    %v199 = vld [vmem:[#allocation11 + $0x58] sm:$0xff]
    %v200 = vld [vmem:[#allocation11 + $0x60] sm:$0xff]
    %v201 = vld [vmem:[#allocation11 + $0x68] sm:$0xff]
    %v202 = vld [vmem:[#allocation11 + $0x70] sm:$0xff]
    %v203 = vld [vmem:[#allocation11 + $0x78] sm:$0xff]
    %204 = vmatprep.subr.mxu0 0.0
    %205 = vmatpush1.msra.mxu0 %v188
    %206 = vmatprep.subr.mxu0 0.0
    %207 = vmatpush1.msra.mxu0 %v189
    %208 = vmatprep.subr.mxu0 0.0
    %209 = vmatpush1.msra.mxu0 %v190
    %210 = vmatprep.subr.mxu0 0.0
    %211 = vmatpush1.msra.mxu0 %v191
    %212 = vmatprep.subr.mxu0 0.0
    %213 = vmatpush1.msra.mxu0 %v192
    %214 = vmatprep.subr.mxu0 0.0
    %215 = vmatpush1.msra.mxu0 %v193
    %216 = vmatprep.subr.mxu0 0.0
    %217 = vmatpush1.msra.mxu0 %v194
    %218 = vmatprep.subr.mxu0 0.0
    %219 = vmatpush1.msra.mxu0 %v195
    %220 = vmatprep.subr.mxu0 0.0
    %221 = vmatpush1.msra.mxu0 %v196
    %222 = vmatprep.subr.mxu0 0.0
    %223 = vmatpush1.msra.mxu0 %v197
    %224 = vmatprep.subr.mxu0 0.0
    %225 = vmatpush1.msra.mxu0 %v198
    %226 = vmatprep.subr.mxu0 0.0
    %227 = vmatpush1.msra.mxu0 %v199
    %228 = vmatprep.subr.mxu0 0.0
    %229 = vmatpush1.msra.mxu0 %v200
    %230 = vmatprep.subr.mxu0 0.0
    %231 = vmatpush1.msra.mxu0 %v201
    %232 = vmatprep.subr.mxu0 0.0
    %233 = vmatpush1.msra.mxu0 %v202
    %234 = vmatprep.subr.mxu0 0.0
    %235 = vmatpush1.msra.mxu0 %v203
    %236 = vmatprep.subr.mxu0 0.0
    %237 = vmatpush1.msra.mxu0 0.0
    %238 = vmatprep.subr.mxu0 0.0
    %239 = vmatpush1.msra.mxu0 0.0
    %240 = vmatprep.subr.mxu0 0.0
    %241 = vmatpush1.msra.mxu0 0.0
    %242 = vmatprep.subr.mxu0 0.0
    %243 = vmatpush1.msra.mxu0 0.0
    %244 = vmatprep.subr.mxu0 0.0
    %245 = vmatpush1.msra.mxu0 0.0
    %246 = vmatprep.subr.mxu0 0.0
    %247 = vmatpush1.msra.mxu0 0.0
    %248 = vmatprep.subr.mxu0 0.0
    %249 = vmatpush1.msra.mxu0 0.0
    %250 = vmatprep.subr.mxu0 0.0
    %251 = vmatpush1.msra.mxu0 0.0
    %252 = vmatprep.subr.mxu0 0.0
    %253 = vmatpush1.msra.mxu0 0.0
    %254 = vmatprep.subr.mxu0 0.0
    %255 = vmatpush1.msra.mxu0 0.0
    %256 = vmatprep.subr.mxu0 0.0
    %257 = vmatpush1.msra.mxu0 0.0
    %258 = vmatprep.subr.mxu0 0.0
    %259 = vmatpush1.msra.mxu0 0.0
    %260 = vmatprep.subr.mxu0 0.0
    %261 = vmatpush1.msra.mxu0 0.0
    %262 = vmatprep.subr.mxu0 0.0
    %263 = vmatpush1.msra.mxu0 0.0
    %264 = vmatprep.subr.mxu0 0.0
    %265 = vmatpush1.msra.mxu0 0.0
    %266 = vmatprep.subr.mxu0 0.0
    %267 = vmatpush1.msra.mxu0 0.0
    %268 = vmatprep.mubr.f32.mxu0 0.0
    %269 = vmatmul.mubr.f32.gmra.mrb[0].mxu0 %v89
    %v270 = vpop.f32.mrb[0].mxu0
    %v271 = vadd.f32 0.0, %v270
    %v272 = vpop.f32.mrb[0].mxu0
    %273 = vdwg.mxu0
    %v274 = vadd.f32 %v187, %v271
    %275 = vst [vmem:[#allocation2] sm:$0xff] %v274
    %277 = vset.pattern.permute.xlu0 0
    %278 = vperm.xlu0 %277, %v89
    %v279 = vpop.permute.xlu0 %278
    %v281 = vmul.f32 %v279, %v88
    %v282 = vld [vmem:[#allocation2] sm:$0xff]
    %v283 = vld [vmem:[#allocation8] sm:$0xff]
    %v284 = vld [vmem:[#allocation8 + $0x8] sm:$0xff]
    %v285 = vld [vmem:[#allocation8 + $0x10] sm:$0xff]
    %v286 = vld [vmem:[#allocation8 + $0x18] sm:$0xff]
    %v287 = vld [vmem:[#allocation8 + $0x20] sm:$0xff]
    %v288 = vld [vmem:[#allocation8 + $0x28] sm:$0xff]
    %v289 = vld [vmem:[#allocation8 + $0x30] sm:$0xff]
    %v290 = vld [vmem:[#allocation8 + $0x38] sm:$0xff]
    %v291 = vld [vmem:[#allocation8 + $0x40] sm:$0xff]
    %v292 = vld [vmem:[#allocation8 + $0x48] sm:$0xff]
    %v293 = vld [vmem:[#allocation8 + $0x50] sm:$0xff]
    %v294 = vld [vmem:[#allocation8 + $0x58] sm:$0xff]
    %v295 = vld [vmem:[#allocation8 + $0x60] sm:$0xff]
    %v296 = vld [vmem:[#allocation8 + $0x68] sm:$0xff]
    %v297 = vld [vmem:[#allocation8 + $0x70] sm:$0xff]
    %v298 = vld [vmem:[#allocation8 + $0x78] sm:$0xff]
    %299 = vmatprep.subr.mxu0 0.0
    %300 = vmatpush1.msra.mxu0 %v283
    %301 = vmatprep.subr.mxu0 0.0
    %302 = vmatpush1.msra.mxu0 %v284
    %303 = vmatprep.subr.mxu0 0.0
    %304 = vmatpush1.msra.mxu0 %v285
    %305 = vmatprep.subr.mxu0 0.0
    %306 = vmatpush1.msra.mxu0 %v286
    %307 = vmatprep.subr.mxu0 0.0
    %308 = vmatpush1.msra.mxu0 %v287
    %309 = vmatprep.subr.mxu0 0.0
    %310 = vmatpush1.msra.mxu0 %v288
    %311 = vmatprep.subr.mxu0 0.0
    %312 = vmatpush1.msra.mxu0 %v289
    %313 = vmatprep.subr.mxu0 0.0
    %314 = vmatpush1.msra.mxu0 %v290
    %315 = vmatprep.subr.mxu0 0.0
    %316 = vmatpush1.msra.mxu0 %v291
    %317 = vmatprep.subr.mxu0 0.0
    %318 = vmatpush1.msra.mxu0 %v292
    %319 = vmatprep.subr.mxu0 0.0
    %320 = vmatpush1.msra.mxu0 %v293
    %321 = vmatprep.subr.mxu0 0.0
    %322 = vmatpush1.msra.mxu0 %v294
    %323 = vmatprep.subr.mxu0 0.0
    %324 = vmatpush1.msra.mxu0 %v295
    %325 = vmatprep.subr.mxu0 0.0
    %326 = vmatpush1.msra.mxu0 %v296
    %327 = vmatprep.subr.mxu0 0.0
    %328 = vmatpush1.msra.mxu0 %v297
    %329 = vmatprep.subr.mxu0 0.0
    %330 = vmatpush1.msra.mxu0 %v298
    %331 = vmatprep.subr.mxu0 0.0
    %332 = vmatpush1.msra.mxu0 0.0
    %333 = vmatprep.subr.mxu0 0.0
    %334 = vmatpush1.msra.mxu0 0.0
    %335 = vmatprep.subr.mxu0 0.0
    %336 = vmatpush1.msra.mxu0 0.0
    %337 = vmatprep.subr.mxu0 0.0
    %338 = vmatpush1.msra.mxu0 0.0
    %339 = vmatprep.subr.mxu0 0.0
    %340 = vmatpush1.msra.mxu0 0.0
    %341 = vmatprep.subr.mxu0 0.0
    %342 = vmatpush1.msra.mxu0 0.0
    %343 = vmatprep.subr.mxu0 0.0
    %344 = vmatpush1.msra.mxu0 0.0
    %345 = vmatprep.subr.mxu0 0.0
    %346 = vmatpush1.msra.mxu0 0.0
    %347 = vmatprep.subr.mxu0 0.0
    %348 = vmatpush1.msra.mxu0 0.0
    %349 = vmatprep.subr.mxu0 0.0
    %350 = vmatpush1.msra.mxu0 0.0
    %351 = vmatprep.subr.mxu0 0.0
    %352 = vmatpush1.msra.mxu0 0.0
    %353 = vmatprep.subr.mxu0 0.0
    %354 = vmatpush1.msra.mxu0 0.0
    %355 = vmatprep.subr.mxu0 0.0
    %356 = vmatpush1.msra.mxu0 0.0
    %357 = vmatprep.subr.mxu0 0.0
    %358 = vmatpush1.msra.mxu0 0.0
    %359 = vmatprep.subr.mxu0 0.0
    %360 = vmatpush1.msra.mxu0 0.0
    %361 = vmatprep.subr.mxu0 0.0
    %362 = vmatpush1.msra.mxu0 0.0
    %363 = vmatprep.mubr.f32.mxu0 0.0
    %364 = vmatmul.mubr.f32.gmra.mrb[0].mxu0 %v281
    %v365 = vpop.f32.mrb[0].mxu0
    %v366 = vadd.f32 0.0, %v365
    %v367 = vpop.f32.mrb[0].mxu0
    %368 = vdwg.mxu0
    %v369 = vadd.f32 %v282, %v366
    %370 = vst [vmem:[#allocation2] sm:$0xff] %v369
    %371 = vset.pattern.permute.xlu0 1
    %372 = vperm.xlu0 %371, %v89
    %v373 = vpop.permute.xlu0 %372
    %v375 = vmul.f32 %v373, %v88
    %v376 = vld [vmem:[#allocation2] sm:$0xff]
    %s377 = scalar_lea.vmem [#allocation8], 128
    %v378 = vld [vmem:[%s377] sm:$0xff]
    %v379 = vld [vmem:[%s377 + $0x8] sm:$0xff]
    %v380 = vld [vmem:[%s377 + $0x10] sm:$0xff]
    %v381 = vld [vmem:[%s377 + $0x18] sm:$0xff]
    %v382 = vld [vmem:[%s377 + $0x20] sm:$0xff]
    %v383 = vld [vmem:[%s377 + $0x28] sm:$0xff]
    %v384 = vld [vmem:[%s377 + $0x30] sm:$0xff]
    %v385 = vld [vmem:[%s377 + $0x38] sm:$0xff]
    %v386 = vld [vmem:[%s377 + $0x40] sm:$0xff]
    %v387 = vld [vmem:[%s377 + $0x48] sm:$0xff]
    %v388 = vld [vmem:[%s377 + $0x50] sm:$0xff]
    %v389 = vld [vmem:[%s377 + $0x58] sm:$0xff]
    %v390 = vld [vmem:[%s377 + $0x60] sm:$0xff]
    %v391 = vld [vmem:[%s377 + $0x68] sm:$0xff]
    %v392 = vld [vmem:[%s377 + $0x70] sm:$0xff]
    %v393 = vld [vmem:[%s377 + $0x78] sm:$0xff]
    %394 = vmatprep.subr.mxu0 0.0
    %395 = vmatpush1.msra.mxu0 %v378
    %396 = vmatprep.subr.mxu0 0.0
    %397 = vmatpush1.msra.mxu0 %v379
    %398 = vmatprep.subr.mxu0 0.0
    %399 = vmatpush1.msra.mxu0 %v380
    %400 = vmatprep.subr.mxu0 0.0
    %401 = vmatpush1.msra.mxu0 %v381
    %402 = vmatprep.subr.mxu0 0.0
    %403 = vmatpush1.msra.mxu0 %v382
    %404 = vmatprep.subr.mxu0 0.0
    %405 = vmatpush1.msra.mxu0 %v383
    %406 = vmatprep.subr.mxu0 0.0
    %407 = vmatpush1.msra.mxu0 %v384
    %408 = vmatprep.subr.mxu0 0.0
    %409 = vmatpush1.msra.mxu0 %v385
    %410 = vmatprep.subr.mxu0 0.0
    %411 = vmatpush1.msra.mxu0 %v386
    %412 = vmatprep.subr.mxu0 0.0
    %413 = vmatpush1.msra.mxu0 %v387
    %414 = vmatprep.subr.mxu0 0.0
    %415 = vmatpush1.msra.mxu0 %v388
    %416 = vmatprep.subr.mxu0 0.0
    %417 = vmatpush1.msra.mxu0 %v389
    %418 = vmatprep.subr.mxu0 0.0
    %419 = vmatpush1.msra.mxu0 %v390
    %420 = vmatprep.subr.mxu0 0.0
    %421 = vmatpush1.msra.mxu0 %v391
    %422 = vmatprep.subr.mxu0 0.0
    %423 = vmatpush1.msra.mxu0 %v392
    %424 = vmatprep.subr.mxu0 0.0
    %425 = vmatpush1.msra.mxu0 %v393
    %426 = vmatprep.subr.mxu0 0.0
    %427 = vmatpush1.msra.mxu0 0.0
    %428 = vmatprep.subr.mxu0 0.0
    %429 = vmatpush1.msra.mxu0 0.0
    %430 = vmatprep.subr.mxu0 0.0
    %431 = vmatpush1.msra.mxu0 0.0
    %432 = vmatprep.subr.mxu0 0.0
    %433 = vmatpush1.msra.mxu0 0.0
    %434 = vmatprep.subr.mxu0 0.0
    %435 = vmatpush1.msra.mxu0 0.0
    %436 = vmatprep.subr.mxu0 0.0
    %437 = vmatpush1.msra.mxu0 0.0
    %438 = vmatprep.subr.mxu0 0.0
    %439 = vmatpush1.msra.mxu0 0.0
    %440 = vmatprep.subr.mxu0 0.0
    %441 = vmatpush1.msra.mxu0 0.0
    %442 = vmatprep.subr.mxu0 0.0
    %443 = vmatpush1.msra.mxu0 0.0
    %444 = vmatprep.subr.mxu0 0.0
    %445 = vmatpush1.msra.mxu0 0.0
    %446 = vmatprep.subr.mxu0 0.0
    %447 = vmatpush1.msra.mxu0 0.0
    %448 = vmatprep.subr.mxu0 0.0
    %449 = vmatpush1.msra.mxu0 0.0
    %450 = vmatprep.subr.mxu0 0.0
    %451 = vmatpush1.msra.mxu0 0.0
    %452 = vmatprep.subr.mxu0 0.0
    %453 = vmatpush1.msra.mxu0 0.0
    %454 = vmatprep.subr.mxu0 0.0
    %455 = vmatpush1.msra.mxu0 0.0
    %456 = vmatprep.subr.mxu0 0.0
    %457 = vmatpush1.msra.mxu0 0.0
    %458 = vmatprep.mubr.f32.mxu0 0.0
    %459 = vmatmul.mubr.f32.gmra.mrb[0].mxu0 %v375
    %v460 = vpop.f32.mrb[0].mxu0
    %v461 = vadd.f32 0.0, %v460
    %v462 = vpop.f32.mrb[0].mxu0
    %463 = vdwg.mxu0
    %v464 = vadd.f32 %v376, %v461
    %465 = vst [vmem:[#allocation2] sm:$0xff] %v464
    %466 = vset.pattern.permute.xlu0 2
    %467 = vperm.xlu0 %466, %v89
    %v468 = vpop.permute.xlu0 %467
    %v470 = vmul.f32 %v468, %v88
    %v471 = vld [vmem:[#allocation2] sm:$0xff]
    %s472 = scalar_lea.vmem [#allocation8], 256
    %v473 = vld [vmem:[%s472] sm:$0xff]
    %v474 = vld [vmem:[%s472 + $0x8] sm:$0xff]
    %v475 = vld [vmem:[%s472 + $0x10] sm:$0xff]
    %v476 = vld [vmem:[%s472 + $0x18] sm:$0xff]
    %v477 = vld [vmem:[%s472 + $0x20] sm:$0xff]
    %v478 = vld [vmem:[%s472 + $0x28] sm:$0xff]
    %v479 = vld [vmem:[%s472 + $0x30] sm:$0xff]
    %v480 = vld [vmem:[%s472 + $0x38] sm:$0xff]
    %v481 = vld [vmem:[%s472 + $0x40] sm:$0xff]
    %v482 = vld [vmem:[%s472 + $0x48] sm:$0xff]
    %v483 = vld [vmem:[%s472 + $0x50] sm:$0xff]
    %v484 = vld [vmem:[%s472 + $0x58] sm:$0xff]
    %v485 = vld [vmem:[%s472 + $0x60] sm:$0xff]
    %v486 = vld [vmem:[%s472 + $0x68] sm:$0xff]
    %v487 = vld [vmem:[%s472 + $0x70] sm:$0xff]
    %v488 = vld [vmem:[%s472 + $0x78] sm:$0xff]
    %489 = vmatprep.subr.mxu0 0.0
    %490 = vmatpush1.msra.mxu0 %v473
    %491 = vmatprep.subr.mxu0 0.0
    %492 = vmatpush1.msra.mxu0 %v474
    %493 = vmatprep.subr.mxu0 0.0
    %494 = vmatpush1.msra.mxu0 %v475
    %495 = vmatprep.subr.mxu0 0.0
    %496 = vmatpush1.msra.mxu0 %v476
    %497 = vmatprep.subr.mxu0 0.0
    %498 = vmatpush1.msra.mxu0 %v477
    %499 = vmatprep.subr.mxu0 0.0
    %500 = vmatpush1.msra.mxu0 %v478
    %501 = vmatprep.subr.mxu0 0.0
    %502 = vmatpush1.msra.mxu0 %v479
    %503 = vmatprep.subr.mxu0 0.0
    %504 = vmatpush1.msra.mxu0 %v480
    %505 = vmatprep.subr.mxu0 0.0
    %506 = vmatpush1.msra.mxu0 %v481
    %507 = vmatprep.subr.mxu0 0.0
    %508 = vmatpush1.msra.mxu0 %v482
    %509 = vmatprep.subr.mxu0 0.0
    %510 = vmatpush1.msra.mxu0 %v483
    %511 = vmatprep.subr.mxu0 0.0
    %512 = vmatpush1.msra.mxu0 %v484
    %513 = vmatprep.subr.mxu0 0.0
    %514 = vmatpush1.msra.mxu0 %v485
    %515 = vmatprep.subr.mxu0 0.0
    %516 = vmatpush1.msra.mxu0 %v486
    %517 = vmatprep.subr.mxu0 0.0
    %518 = vmatpush1.msra.mxu0 %v487
    %519 = vmatprep.subr.mxu0 0.0
    %520 = vmatpush1.msra.mxu0 %v488
    %521 = vmatprep.subr.mxu0 0.0
    %522 = vmatpush1.msra.mxu0 0.0
    %523 = vmatprep.subr.mxu0 0.0
    %524 = vmatpush1.msra.mxu0 0.0
    %525 = vmatprep.subr.mxu0 0.0
    %526 = vmatpush1.msra.mxu0 0.0
    %527 = vmatprep.subr.mxu0 0.0
    %528 = vmatpush1.msra.mxu0 0.0
    %529 = vmatprep.subr.mxu0 0.0
    %530 = vmatpush1.msra.mxu0 0.0
    %531 = vmatprep.subr.mxu0 0.0
    %532 = vmatpush1.msra.mxu0 0.0
    %533 = vmatprep.subr.mxu0 0.0
    %534 = vmatpush1.msra.mxu0 0.0
    %535 = vmatprep.subr.mxu0 0.0
    %536 = vmatpush1.msra.mxu0 0.0
    %537 = vmatprep.subr.mxu0 0.0
    %538 = vmatpush1.msra.mxu0 0.0
    %539 = vmatprep.subr.mxu0 0.0
    %540 = vmatpush1.msra.mxu0 0.0
    %541 = vmatprep.subr.mxu0 0.0
    %542 = vmatpush1.msra.mxu0 0.0
    %543 = vmatprep.subr.mxu0 0.0
    %544 = vmatpush1.msra.mxu0 0.0
    %545 = vmatprep.subr.mxu0 0.0
    %546 = vmatpush1.msra.mxu0 0.0
    %547 = vmatprep.subr.mxu0 0.0
    %548 = vmatpush1.msra.mxu0 0.0
    %549 = vmatprep.subr.mxu0 0.0
    %550 = vmatpush1.msra.mxu0 0.0
    %551 = vmatprep.subr.mxu0 0.0
    %552 = vmatpush1.msra.mxu0 0.0
    %553 = vmatprep.mubr.f32.mxu0 0.0
    %554 = vmatmul.mubr.f32.gmra.mrb[0].mxu0 %v470
    %v555 = vpop.f32.mrb[0].mxu0
    %v556 = vadd.f32 0.0, %v555
    %v557 = vpop.f32.mrb[0].mxu0
    %558 = vdwg.mxu0
    %v559 = vadd.f32 %v471, %v556
    %560 = vst [vmem:[#allocation2] sm:$0xff] %v559
    %561 = vset.pattern.permute.xlu0 3
    %562 = vperm.xlu0 %561, %v89
    %v563 = vpop.permute.xlu0 %562
    %v565 = vmul.f32 %v563, %v88
    %v566 = vld [vmem:[#allocation2] sm:$0xff]
    %s567 = scalar_lea.vmem [#allocation8], 384
    %v568 = vld [vmem:[%s567] sm:$0xff]
    %v569 = vld [vmem:[%s567 + $0x8] sm:$0xff]
    %v570 = vld [vmem:[%s567 + $0x10] sm:$0xff]
    %v571 = vld [vmem:[%s567 + $0x18] sm:$0xff]
    %v572 = vld [vmem:[%s567 + $0x20] sm:$0xff]
    %v573 = vld [vmem:[%s567 + $0x28] sm:$0xff]
    %v574 = vld [vmem:[%s567 + $0x30] sm:$0xff]
    %v575 = vld [vmem:[%s567 + $0x38] sm:$0xff]
    %v576 = vld [vmem:[%s567 + $0x40] sm:$0xff]
    %v577 = vld [vmem:[%s567 + $0x48] sm:$0xff]
    %v578 = vld [vmem:[%s567 + $0x50] sm:$0xff]
    %v579 = vld [vmem:[%s567 + $0x58] sm:$0xff]
    %v580 = vld [vmem:[%s567 + $0x60] sm:$0xff]
    %v581 = vld [vmem:[%s567 + $0x68] sm:$0xff]
    %v582 = vld [vmem:[%s567 + $0x70] sm:$0xff]
    %v583 = vld [vmem:[%s567 + $0x78] sm:$0xff]
    %584 = vmatprep.subr.mxu0 0.0
    %585 = vmatpush1.msra.mxu0 %v568
    %586 = vmatprep.subr.mxu0 0.0
    %587 = vmatpush1.msra.mxu0 %v569
    %588 = vmatprep.subr.mxu0 0.0
    %589 = vmatpush1.msra.mxu0 %v570
    %590 = vmatprep.subr.mxu0 0.0
    %591 = vmatpush1.msra.mxu0 %v571
    %592 = vmatprep.subr.mxu0 0.0
    %593 = vmatpush1.msra.mxu0 %v572
    %594 = vmatprep.subr.mxu0 0.0
    %595 = vmatpush1.msra.mxu0 %v573
    %596 = vmatprep.subr.mxu0 0.0
    %597 = vmatpush1.msra.mxu0 %v574
    %598 = vmatprep.subr.mxu0 0.0
    %599 = vmatpush1.msra.mxu0 %v575
    %600 = vmatprep.subr.mxu0 0.0
    %601 = vmatpush1.msra.mxu0 %v576
    %602 = vmatprep.subr.mxu0 0.0
    %603 = vmatpush1.msra.mxu0 %v577
    %604 = vmatprep.subr.mxu0 0.0
    %605 = vmatpush1.msra.mxu0 %v578
    %606 = vmatprep.subr.mxu0 0.0
    %607 = vmatpush1.msra.mxu0 %v579
    %608 = vmatprep.subr.mxu0 0.0
    %609 = vmatpush1.msra.mxu0 %v580
    %610 = vmatprep.subr.mxu0 0.0
    %611 = vmatpush1.msra.mxu0 %v581
    %612 = vmatprep.subr.mxu0 0.0
    %613 = vmatpush1.msra.mxu0 %v582
    %614 = vmatprep.subr.mxu0 0.0
    %615 = vmatpush1.msra.mxu0 %v583
    %616 = vmatprep.subr.mxu0 0.0
    %617 = vmatpush1.msra.mxu0 0.0
    %618 = vmatprep.subr.mxu0 0.0
    %619 = vmatpush1.msra.mxu0 0.0
    %620 = vmatprep.subr.mxu0 0.0
    %621 = vmatpush1.msra.mxu0 0.0
    %622 = vmatprep.subr.mxu0 0.0
    %623 = vmatpush1.msra.mxu0 0.0
    %624 = vmatprep.subr.mxu0 0.0
    %625 = vmatpush1.msra.mxu0 0.0
    %626 = vmatprep.subr.mxu0 0.0
    %627 = vmatpush1.msra.mxu0 0.0
    %628 = vmatprep.subr.mxu0 0.0
    %629 = vmatpush1.msra.mxu0 0.0
    %630 = vmatprep.subr.mxu0 0.0
    %631 = vmatpush1.msra.mxu0 0.0
    %632 = vmatprep.subr.mxu0 0.0
    %633 = vmatpush1.msra.mxu0 0.0
    %634 = vmatprep.subr.mxu0 0.0
    %635 = vmatpush1.msra.mxu0 0.0
    %636 = vmatprep.subr.mxu0 0.0
    %637 = vmatpush1.msra.mxu0 0.0
    %638 = vmatprep.subr.mxu0 0.0
    %639 = vmatpush1.msra.mxu0 0.0
    %640 = vmatprep.subr.mxu0 0.0
    %641 = vmatpush1.msra.mxu0 0.0
    %642 = vmatprep.subr.mxu0 0.0
    %643 = vmatpush1.msra.mxu0 0.0
    %644 = vmatprep.subr.mxu0 0.0
    %645 = vmatpush1.msra.mxu0 0.0
    %646 = vmatprep.subr.mxu0 0.0
    %647 = vmatpush1.msra.mxu0 0.0
    %648 = vmatprep.mubr.f32.mxu0 0.0
    %649 = vmatmul.mubr.f32.gmra.mrb[0].mxu0 %v565
    %v650 = vpop.f32.mrb[0].mxu0
    %v651 = vadd.f32 0.0, %v650
    %v652 = vpop.f32.mrb[0].mxu0
    %653 = vdwg.mxu0
    %v654 = vadd.f32 %v566, %v651
    %655 = vst [vmem:[#allocation2] sm:$0xff] %v654
    %656 = vset.pattern.permute.xlu0 4
    %657 = vperm.xlu0 %656, %v89
    %v658 = vpop.permute.xlu0 %657
    %v660 = vmul.f32 %v658, %v88
    %v661 = vld [vmem:[#allocation2] sm:$0xff]
    %s662 = scalar_lea.vmem [#allocation8], 512
    %v663 = vld [vmem:[%s662] sm:$0xff]
    %v664 = vld [vmem:[%s662 + $0x8] sm:$0xff]
    %v665 = vld [vmem:[%s662 + $0x10] sm:$0xff]
    %v666 = vld [vmem:[%s662 + $0x18] sm:$0xff]
    %v667 = vld [vmem:[%s662 + $0x20] sm:$0xff]
    %v668 = vld [vmem:[%s662 + $0x28] sm:$0xff]
    %v669 = vld [vmem:[%s662 + $0x30] sm:$0xff]
    %v670 = vld [vmem:[%s662 + $0x38] sm:$0xff]
    %v671 = vld [vmem:[%s662 + $0x40] sm:$0xff]
    %v672 = vld [vmem:[%s662 + $0x48] sm:$0xff]
    %v673 = vld [vmem:[%s662 + $0x50] sm:$0xff]
    %v674 = vld [vmem:[%s662 + $0x58] sm:$0xff]
    %v675 = vld [vmem:[%s662 + $0x60] sm:$0xff]
    %v676 = vld [vmem:[%s662 + $0x68] sm:$0xff]
    %v677 = vld [vmem:[%s662 + $0x70] sm:$0xff]
    %v678 = vld [vmem:[%s662 + $0x78] sm:$0xff]
    %679 = vmatprep.subr.mxu0 0.0
    %680 = vmatpush1.msra.mxu0 %v663
    %681 = vmatprep.subr.mxu0 0.0
    %682 = vmatpush1.msra.mxu0 %v664
    %683 = vmatprep.subr.mxu0 0.0
    %684 = vmatpush1.msra.mxu0 %v665
    %685 = vmatprep.subr.mxu0 0.0
    %686 = vmatpush1.msra.mxu0 %v666
    %687 = vmatprep.subr.mxu0 0.0
    %688 = vmatpush1.msra.mxu0 %v667
    %689 = vmatprep.subr.mxu0 0.0
    %690 = vmatpush1.msra.mxu0 %v668
    %691 = vmatprep.subr.mxu0 0.0
    %692 = vmatpush1.msra.mxu0 %v669
    %693 = vmatprep.subr.mxu0 0.0
    %694 = vmatpush1.msra.mxu0 %v670
    %695 = vmatprep.subr.mxu0 0.0
    %696 = vmatpush1.msra.mxu0 %v671
    %697 = vmatprep.subr.mxu0 0.0
    %698 = vmatpush1.msra.mxu0 %v672
    %699 = vmatprep.subr.mxu0 0.0
    %700 = vmatpush1.msra.mxu0 %v673
    %701 = vmatprep.subr.mxu0 0.0
    %702 = vmatpush1.msra.mxu0 %v674
    %703 = vmatprep.subr.mxu0 0.0
    %704 = vmatpush1.msra.mxu0 %v675
    %705 = vmatprep.subr.mxu0 0.0
    %706 = vmatpush1.msra.mxu0 %v676
    %707 = vmatprep.subr.mxu0 0.0
    %708 = vmatpush1.msra.mxu0 %v677
    %709 = vmatprep.subr.mxu0 0.0
    %710 = vmatpush1.msra.mxu0 %v678
    %711 = vmatprep.subr.mxu0 0.0
    %712 = vmatpush1.msra.mxu0 0.0
    %713 = vmatprep.subr.mxu0 0.0
    %714 = vmatpush1.msra.mxu0 0.0
    %715 = vmatprep.subr.mxu0 0.0
    %716 = vmatpush1.msra.mxu0 0.0
    %717 = vmatprep.subr.mxu0 0.0
    %718 = vmatpush1.msra.mxu0 0.0
    %719 = vmatprep.subr.mxu0 0.0
    %720 = vmatpush1.msra.mxu0 0.0
    %721 = vmatprep.subr.mxu0 0.0
    %722 = vmatpush1.msra.mxu0 0.0
    %723 = vmatprep.subr.mxu0 0.0
    %724 = vmatpush1.msra.mxu0 0.0
    %725 = vmatprep.subr.mxu0 0.0
    %726 = vmatpush1.msra.mxu0 0.0
    %727 = vmatprep.subr.mxu0 0.0
    %728 = vmatpush1.msra.mxu0 0.0
    %729 = vmatprep.subr.mxu0 0.0
    %730 = vmatpush1.msra.mxu0 0.0
    %731 = vmatprep.subr.mxu0 0.0
    %732 = vmatpush1.msra.mxu0 0.0
    %733 = vmatprep.subr.mxu0 0.0
    %734 = vmatpush1.msra.mxu0 0.0
    %735 = vmatprep.subr.mxu0 0.0
    %736 = vmatpush1.msra.mxu0 0.0
    %737 = vmatprep.subr.mxu0 0.0
    %738 = vmatpush1.msra.mxu0 0.0
    %739 = vmatprep.subr.mxu0 0.0
    %740 = vmatpush1.msra.mxu0 0.0
    %741 = vmatprep.subr.mxu0 0.0
    %742 = vmatpush1.msra.mxu0 0.0
    %743 = vmatprep.mubr.f32.mxu0 0.0
    %744 = vmatmul.mubr.f32.gmra.mrb[0].mxu0 %v660
    %v745 = vpop.f32.mrb[0].mxu0
    %v746 = vadd.f32 0.0, %v745
    %v747 = vpop.f32.mrb[0].mxu0
    %748 = vdwg.mxu0
    %v749 = vadd.f32 %v661, %v746
    %750 = vst [vmem:[#allocation2] sm:$0xff] %v749
    %751 = vset.pattern.permute.xlu0 5
    %752 = vperm.xlu0 %751, %v89
    %v753 = vpop.permute.xlu0 %752
    %v755 = vmul.f32 %v753, %v88
    %v756 = vld [vmem:[#allocation2] sm:$0xff]
    %s757 = scalar_lea.vmem [#allocation8], 640
    %v758 = vld [vmem:[%s757] sm:$0xff]
    %v759 = vld [vmem:[%s757 + $0x8] sm:$0xff]
    %v760 = vld [vmem:[%s757 + $0x10] sm:$0xff]
    %v761 = vld [vmem:[%s757 + $0x18] sm:$0xff]
    %v762 = vld [vmem:[%s757 + $0x20] sm:$0xff]
    %v763 = vld [vmem:[%s757 + $0x28] sm:$0xff]
    %v764 = vld [vmem:[%s757 + $0x30] sm:$0xff]
    %v765 = vld [vmem:[%s757 + $0x38] sm:$0xff]
    %v766 = vld [vmem:[%s757 + $0x40] sm:$0xff]
    %v767 = vld [vmem:[%s757 + $0x48] sm:$0xff]
    %v768 = vld [vmem:[%s757 + $0x50] sm:$0xff]
    %v769 = vld [vmem:[%s757 + $0x58] sm:$0xff]
    %v770 = vld [vmem:[%s757 + $0x60] sm:$0xff]
    %v771 = vld [vmem:[%s757 + $0x68] sm:$0xff]
    %v772 = vld [vmem:[%s757 + $0x70] sm:$0xff]
    %v773 = vld [vmem:[%s757 + $0x78] sm:$0xff]
    %774 = vmatprep.subr.mxu0 0.0
    %775 = vmatpush1.msra.mxu0 %v758
    %776 = vmatprep.subr.mxu0 0.0
    %777 = vmatpush1.msra.mxu0 %v759
    %778 = vmatprep.subr.mxu0 0.0
    %779 = vmatpush1.msra.mxu0 %v760
    %780 = vmatprep.subr.mxu0 0.0
    %781 = vmatpush1.msra.mxu0 %v761
    %782 = vmatprep.subr.mxu0 0.0
    %783 = vmatpush1.msra.mxu0 %v762
    %784 = vmatprep.subr.mxu0 0.0
    %785 = vmatpush1.msra.mxu0 %v763
    %786 = vmatprep.subr.mxu0 0.0
    %787 = vmatpush1.msra.mxu0 %v764
    %788 = vmatprep.subr.mxu0 0.0
    %789 = vmatpush1.msra.mxu0 %v765
    %790 = vmatprep.subr.mxu0 0.0
    %791 = vmatpush1.msra.mxu0 %v766
    %792 = vmatprep.subr.mxu0 0.0
    %793 = vmatpush1.msra.mxu0 %v767
    %794 = vmatprep.subr.mxu0 0.0
    %795 = vmatpush1.msra.mxu0 %v768
    %796 = vmatprep.subr.mxu0 0.0
    %797 = vmatpush1.msra.mxu0 %v769
    %798 = vmatprep.subr.mxu0 0.0
    %799 = vmatpush1.msra.mxu0 %v770
    %800 = vmatprep.subr.mxu0 0.0
    %801 = vmatpush1.msra.mxu0 %v771
    %802 = vmatprep.subr.mxu0 0.0
    %803 = vmatpush1.msra.mxu0 %v772
    %804 = vmatprep.subr.mxu0 0.0
    %805 = vmatpush1.msra.mxu0 %v773
    %806 = vmatprep.subr.mxu0 0.0
    %807 = vmatpush1.msra.mxu0 0.0
    %808 = vmatprep.subr.mxu0 0.0
    %809 = vmatpush1.msra.mxu0 0.0
    %810 = vmatprep.subr.mxu0 0.0
    %811 = vmatpush1.msra.mxu0 0.0
    %812 = vmatprep.subr.mxu0 0.0
    %813 = vmatpush1.msra.mxu0 0.0
    %814 = vmatprep.subr.mxu0 0.0
    %815 = vmatpush1.msra.mxu0 0.0
    %816 = vmatprep.subr.mxu0 0.0
    %817 = vmatpush1.msra.mxu0 0.0
    %818 = vmatprep.subr.mxu0 0.0
    %819 = vmatpush1.msra.mxu0 0.0
    %820 = vmatprep.subr.mxu0 0.0
    %821 = vmatpush1.msra.mxu0 0.0
    %822 = vmatprep.subr.mxu0 0.0
    %823 = vmatpush1.msra.mxu0 0.0
    %824 = vmatprep.subr.mxu0 0.0
    %825 = vmatpush1.msra.mxu0 0.0
    %826 = vmatprep.subr.mxu0 0.0
    %827 = vmatpush1.msra.mxu0 0.0
    %828 = vmatprep.subr.mxu0 0.0
    %829 = vmatpush1.msra.mxu0 0.0
    %830 = vmatprep.subr.mxu0 0.0
    %831 = vmatpush1.msra.mxu0 0.0
    %832 = vmatprep.subr.mxu0 0.0
    %833 = vmatpush1.msra.mxu0 0.0
    %834 = vmatprep.subr.mxu0 0.0
    %835 = vmatpush1.msra.mxu0 0.0
    %836 = vmatprep.subr.mxu0 0.0
    %837 = vmatpush1.msra.mxu0 0.0
    %838 = vmatprep.mubr.f32.mxu0 0.0
    %839 = vmatmul.mubr.f32.gmra.mrb[0].mxu0 %v755
    %v840 = vpop.f32.mrb[0].mxu0
    %v841 = vadd.f32 0.0, %v840
    %v842 = vpop.f32.mrb[0].mxu0
    %843 = vdwg.mxu0
    %v844 = vadd.f32 %v756, %v841
    %845 = vst [vmem:[#allocation2] sm:$0xff] %v844
    %846 = vset.pattern.permute.xlu0 6
    %847 = vperm.xlu0 %846, %v89
    %v848 = vpop.permute.xlu0 %847
    %v850 = vmul.f32 %v848, %v88
    %v851 = vld [vmem:[#allocation2] sm:$0xff]
    %s852 = scalar_lea.vmem [#allocation8], 768
    %v853 = vld [vmem:[%s852] sm:$0xff]
    %v854 = vld [vmem:[%s852 + $0x8] sm:$0xff]
    %v855 = vld [vmem:[%s852 + $0x10] sm:$0xff]
    %v856 = vld [vmem:[%s852 + $0x18] sm:$0xff]
    %v857 = vld [vmem:[%s852 + $0x20] sm:$0xff]
    %v858 = vld [vmem:[%s852 + $0x28] sm:$0xff]
    %v859 = vld [vmem:[%s852 + $0x30] sm:$0xff]
    %v860 = vld [vmem:[%s852 + $0x38] sm:$0xff]
    %v861 = vld [vmem:[%s852 + $0x40] sm:$0xff]
    %v862 = vld [vmem:[%s852 + $0x48] sm:$0xff]
    %v863 = vld [vmem:[%s852 + $0x50] sm:$0xff]
    %v864 = vld [vmem:[%s852 + $0x58] sm:$0xff]
    %v865 = vld [vmem:[%s852 + $0x60] sm:$0xff]
    %v866 = vld [vmem:[%s852 + $0x68] sm:$0xff]
    %v867 = vld [vmem:[%s852 + $0x70] sm:$0xff]
    %v868 = vld [vmem:[%s852 + $0x78] sm:$0xff]
    %869 = vmatprep.subr.mxu0 0.0
    %870 = vmatpush1.msra.mxu0 %v853
    %871 = vmatprep.subr.mxu0 0.0
    %872 = vmatpush1.msra.mxu0 %v854
    %873 = vmatprep.subr.mxu0 0.0
    %874 = vmatpush1.msra.mxu0 %v855
    %875 = vmatprep.subr.mxu0 0.0
    %876 = vmatpush1.msra.mxu0 %v856
    %877 = vmatprep.subr.mxu0 0.0
    %878 = vmatpush1.msra.mxu0 %v857
    %879 = vmatprep.subr.mxu0 0.0
    %880 = vmatpush1.msra.mxu0 %v858
    %881 = vmatprep.subr.mxu0 0.0
    %882 = vmatpush1.msra.mxu0 %v859
    %883 = vmatprep.subr.mxu0 0.0
    %884 = vmatpush1.msra.mxu0 %v860
    %885 = vmatprep.subr.mxu0 0.0
    %886 = vmatpush1.msra.mxu0 %v861
    %887 = vmatprep.subr.mxu0 0.0
    %888 = vmatpush1.msra.mxu0 %v862
    %889 = vmatprep.subr.mxu0 0.0
    %890 = vmatpush1.msra.mxu0 %v863
    %891 = vmatprep.subr.mxu0 0.0
    %892 = vmatpush1.msra.mxu0 %v864
    %893 = vmatprep.subr.mxu0 0.0
    %894 = vmatpush1.msra.mxu0 %v865
    %895 = vmatprep.subr.mxu0 0.0
    %896 = vmatpush1.msra.mxu0 %v866
    %897 = vmatprep.subr.mxu0 0.0
    %898 = vmatpush1.msra.mxu0 %v867
    %899 = vmatprep.subr.mxu0 0.0
    %900 = vmatpush1.msra.mxu0 %v868
    %901 = vmatprep.subr.mxu0 0.0
    %902 = vmatpush1.msra.mxu0 0.0
    %903 = vmatprep.subr.mxu0 0.0
    %904 = vmatpush1.msra.mxu0 0.0
    %905 = vmatprep.subr.mxu0 0.0
    %906 = vmatpush1.msra.mxu0 0.0
    %907 = vmatprep.subr.mxu0 0.0
    %908 = vmatpush1.msra.mxu0 0.0
    %909 = vmatprep.subr.mxu0 0.0
    %910 = vmatpush1.msra.mxu0 0.0
    %911 = vmatprep.subr.mxu0 0.0
    %912 = vmatpush1.msra.mxu0 0.0
    %913 = vmatprep.subr.mxu0 0.0
    %914 = vmatpush1.msra.mxu0 0.0
    %915 = vmatprep.subr.mxu0 0.0
    %916 = vmatpush1.msra.mxu0 0.0
    %917 = vmatprep.subr.mxu0 0.0
    %918 = vmatpush1.msra.mxu0 0.0
    %919 = vmatprep.subr.mxu0 0.0
    %920 = vmatpush1.msra.mxu0 0.0
    %921 = vmatprep.subr.mxu0 0.0
    %922 = vmatpush1.msra.mxu0 0.0
    %923 = vmatprep.subr.mxu0 0.0
    %924 = vmatpush1.msra.mxu0 0.0
    %925 = vmatprep.subr.mxu0 0.0
    %926 = vmatpush1.msra.mxu0 0.0
    %927 = vmatprep.subr.mxu0 0.0
    %928 = vmatpush1.msra.mxu0 0.0
    %929 = vmatprep.subr.mxu0 0.0
    %930 = vmatpush1.msra.mxu0 0.0
    %931 = vmatprep.subr.mxu0 0.0
    %932 = vmatpush1.msra.mxu0 0.0
    %933 = vmatprep.mubr.f32.mxu0 0.0
    %934 = vmatmul.mubr.f32.gmra.mrb[0].mxu0 %v850
    %v935 = vpop.f32.mrb[0].mxu0
    %v936 = vadd.f32 0.0, %v935
    %v937 = vpop.f32.mrb[0].mxu0
    %938 = vdwg.mxu0
    %v939 = vadd.f32 %v851, %v936
    %940 = vst [vmem:[#allocation2] sm:$0xff] %v939
    %941 = vset.pattern.permute.xlu0 7
    %942 = vperm.xlu0 %941, %v89
    %v943 = vpop.permute.xlu0 %942
    %v945 = vmul.f32 %v943, %v88
    %v946 = vld [vmem:[#allocation2] sm:$0xff]
    %s947 = scalar_lea.vmem [#allocation8], 896
    %v948 = vld [vmem:[%s947] sm:$0xff]
    %v949 = vld [vmem:[%s947 + $0x8] sm:$0xff]
    %v950 = vld [vmem:[%s947 + $0x10] sm:$0xff]
    %v951 = vld [vmem:[%s947 + $0x18] sm:$0xff]
    %v952 = vld [vmem:[%s947 + $0x20] sm:$0xff]
    %v953 = vld [vmem:[%s947 + $0x28] sm:$0xff]
    %v954 = vld [vmem:[%s947 + $0x30] sm:$0xff]
    %v955 = vld [vmem:[%s947 + $0x38] sm:$0xff]
    %v956 = vld [vmem:[%s947 + $0x40] sm:$0xff]
    %v957 = vld [vmem:[%s947 + $0x48] sm:$0xff]
    %v958 = vld [vmem:[%s947 + $0x50] sm:$0xff]
    %v959 = vld [vmem:[%s947 + $0x58] sm:$0xff]
    %v960 = vld [vmem:[%s947 + $0x60] sm:$0xff]
    %v961 = vld [vmem:[%s947 + $0x68] sm:$0xff]
    %v962 = vld [vmem:[%s947 + $0x70] sm:$0xff]
    %v963 = vld [vmem:[%s947 + $0x78] sm:$0xff]
    %964 = vmatprep.subr.mxu0 0.0
    %965 = vmatpush1.msra.mxu0 %v948
    %966 = vmatprep.subr.mxu0 0.0
    %967 = vmatpush1.msra.mxu0 %v949
    %968 = vmatprep.subr.mxu0 0.0
    %969 = vmatpush1.msra.mxu0 %v950
    %970 = vmatprep.subr.mxu0 0.0
    %971 = vmatpush1.msra.mxu0 %v951
    %972 = vmatprep.subr.mxu0 0.0
    %973 = vmatpush1.msra.mxu0 %v952
    %974 = vmatprep.subr.mxu0 0.0
    %975 = vmatpush1.msra.mxu0 %v953
    %976 = vmatprep.subr.mxu0 0.0
    %977 = vmatpush1.msra.mxu0 %v954
    %978 = vmatprep.subr.mxu0 0.0
    %979 = vmatpush1.msra.mxu0 %v955
    %980 = vmatprep.subr.mxu0 0.0
    %981 = vmatpush1.msra.mxu0 %v956
    %982 = vmatprep.subr.mxu0 0.0
    %983 = vmatpush1.msra.mxu0 %v957
    %984 = vmatprep.subr.mxu0 0.0
    %985 = vmatpush1.msra.mxu0 %v958
    %986 = vmatprep.subr.mxu0 0.0
    %987 = vmatpush1.msra.mxu0 %v959
    %988 = vmatprep.subr.mxu0 0.0
    %989 = vmatpush1.msra.mxu0 %v960
    %990 = vmatprep.subr.mxu0 0.0
    %991 = vmatpush1.msra.mxu0 %v961
    %992 = vmatprep.subr.mxu0 0.0
    %993 = vmatpush1.msra.mxu0 %v962
    %994 = vmatprep.subr.mxu0 0.0
    %995 = vmatpush1.msra.mxu0 %v963
    %996 = vmatprep.subr.mxu0 0.0
    %997 = vmatpush1.msra.mxu0 0.0
    %998 = vmatprep.subr.mxu0 0.0
    %999 = vmatpush1.msra.mxu0 0.0
    %1000 = vmatprep.subr.mxu0 0.0
    %1001 = vmatpush1.msra.mxu0 0.0
    %1002 = vmatprep.subr.mxu0 0.0
    %1003 = vmatpush1.msra.mxu0 0.0
    %1004 = vmatprep.subr.mxu0 0.0
    %1005 = vmatpush1.msra.mxu0 0.0
    %1006 = vmatprep.subr.mxu0 0.0
    %1007 = vmatpush1.msra.mxu0 0.0
    %1008 = vmatprep.subr.mxu0 0.0
    %1009 = vmatpush1.msra.mxu0 0.0
    %1010 = vmatprep.subr.mxu0 0.0
    %1011 = vmatpush1.msra.mxu0 0.0
    %1012 = vmatprep.subr.mxu0 0.0
    %1013 = vmatpush1.msra.mxu0 0.0
    %1014 = vmatprep.subr.mxu0 0.0
    %1015 = vmatpush1.msra.mxu0 0.0
    %1016 = vmatprep.subr.mxu0 0.0
    %1017 = vmatpush1.msra.mxu0 0.0
    %1018 = vmatprep.subr.mxu0 0.0
    %1019 = vmatpush1.msra.mxu0 0.0
    %1020 = vmatprep.subr.mxu0 0.0
    %1021 = vmatpush1.msra.mxu0 0.0
    %1022 = vmatprep.subr.mxu0 0.0
    %1023 = vmatpush1.msra.mxu0 0.0
    %1024 = vmatprep.subr.mxu0 0.0
    %1025 = vmatpush1.msra.mxu0 0.0
    %1026 = vmatprep.subr.mxu0 0.0
    %1027 = vmatpush1.msra.mxu0 0.0
    %1028 = vmatprep.mubr.f32.mxu0 0.0
    %1029 = vmatmul.mubr.f32.gmra.mrb[0].mxu0 %v945
    %v1030 = vpop.f32.mrb[0].mxu0
    %v1031 = vadd.f32 0.0, %v1030
    %v1032 = vpop.f32.mrb[0].mxu0
    %1033 = vdwg.mxu0
    %v1034 = vadd.f32 %v946, %v1031
    %1035 = vst [vmem:[#allocation2] sm:$0xff] %v1034
    %v1036 = vld [vmem:[#allocation2] sm:$0xff]
    %1037 = vst [vmem:[#allocation12] sm:$0xff] %v1036
    // Predicated region
    $region46: #{tpu_custom_call.1} parent=1 // pred_check
      _
    $region47: #{tpu_custom_call.1} parent=1 // pred_check_branch
      %1039 = sbr.rel (0) target = $region49
    $region48: #{tpu_custom_call.1} parent=1 // pred_region
      %s1041 = ssub.s32 128, 128
      %1042 = vsyncadd [#allocation5], %s1041
      %s1044 = sshll.u32 [#allocation12], 4
      %s1045 = int_to_ptr.vmem [resolvable:$true] %s1044
      %1047 = dma.vmem_to_hbm [thread:$0]  %s1045, 128, %s6, [#allocation5]
    $region49: #{tpu_custom_call.1} parent=1 // pred_fallthru
      _
    // Predicated region
    $region50: #{tpu_custom_call.1} parent=1 // pred_check
      _
    $region51: #{tpu_custom_call.1} parent=1 // pred_check_branch
      %1049 = sbr.rel (0) target = $region53
    $region52: #{tpu_custom_call.1} parent=1 // pred_region
      %1050 = dma.done [#allocation5], 128
    $region53: #{tpu_custom_call.1} parent=1 // pred_fallthru
      _
    %1051 = vsyncpa [#allocation4], 1
    %1052 = vsyncpa [#allocation7], 1
    %1053 = vsyncpa [#allocation10], 1
    %1054 = vsyncpa [#allocation5], 1

</llo_original>
